<compile_context>
chip_gen: v5e
topology: v5e:2x2
jax: 0.10.0
libtpu: 0.0.40
codegen_flags: <defaults>
</compile_context>

<pallas_src>
import functools

import jax
import jax.numpy as jnp
from jax.experimental import pallas as pl
from jax.experimental.pallas import tpu as pltpu

_LANES = 128


def _round_up(x, m):
    return ((x + m - 1) // m) * m


def _sam_loss_kernel(pred_ref, targ_ref, iou_ref, out_ref,
                     focal_acc, inter_acc, ssum_acc, tsum_acc,
                     *, gamma, hw, hw_tile, acc_lanes):
    k = pl.program_id(1)

    @pl.when(k == 0)
    def _():
        focal_acc[...] = jnp.zeros_like(focal_acc)
        inter_acc[...] = jnp.zeros_like(inter_acc)
        ssum_acc[...] = jnp.zeros_like(ssum_acc)
        tsum_acc[...] = jnp.zeros_like(tsum_acc)

    p = pred_ref[...].astype(jnp.float32)     # (rt, ht) logits
    t = targ_ref[...].astype(jnp.float32)     # (rt, ht) targets

    # ---- BinaryFocalLoss(gamma, alpha=None), closed softplus form ----
    #   t==1: log_pt = -softplus(1-2p) ; t==0: log_pt = -softplus(2p-1)
    #   pt = sigmoid(z), derived from e = exp(-|z|) (no second heavy exp).
    z = jnp.where(t > 0.5, 2.0 * p - 1.0, 1.0 - 2.0 * p)
    e = jnp.exp(-jnp.abs(z))
    log_pt = -(jnp.maximum(-z, 0.0) + jnp.log1p(e))
    pt = jnp.where(z >= 0.0, 1.0, e) * pl.reciprocal(1.0 + e, approx=True)
    one_m_pt = 1.0 - pt
    if gamma == 2.0:                          # trace-time branch: plain VPU square
        w = one_m_pt * one_m_pt
    else:
        w = one_m_pt ** gamma
    focal_px = -w * log_pt

    # ---- sigmoid activation for dice / iou ----
    s = jax.nn.sigmoid(p)

    # Mask the HW tail of the last block (inputs are NOT padded in HBM).
    if hw % hw_tile != 0:
        lane = jax.lax.broadcasted_iota(jnp.int32, p.shape, 1)
        valid = (k * hw_tile + lane) < hw
        focal_px = jnp.where(valid, focal_px, 0.0)
        s = jnp.where(valid, s, 0.0)
        t = jnp.where(valid, t, 0.0)

    # Lane-dense accumulation: fold hw_tile lanes into acc_lanes with static
    # whole-vreg slices (pure VPU adds); defer the cross-lane reduce.
    n_groups = hw_tile // acc_lanes

    def fold(x):
        acc = x[:, 0:acc_lanes]
        for j in range(1, n_groups):
            acc = acc + x[:, j * acc_lanes:(j + 1) * acc_lanes]
        return acc

    focal_acc[...] += fold(focal_px)
    inter_acc[...] += fold(s * t)
    ssum_acc[...] += fold(s)
    tsum_acc[...] += fold(t)

    @pl.when(k == pl.num_programs(1) - 1)
    def _():
        focal = jnp.sum(focal_acc[...], axis=-1, keepdims=True) * (1.0 / hw)
        inter = jnp.sum(inter_acc[...], axis=-1, keepdims=True)
        ssum = jnp.sum(ssum_acc[...], axis=-1, keepdims=True)
        tsum = jnp.sum(tsum_acc[...], axis=-1, keepdims=True)
        dice = 1.0 - (2.0 * inter + 1.0) / (ssum + tsum + 1.0)
        iou_target = 1.0 - (inter + 1.0) / (ssum + tsum - inter + 1.0)
        mse = jnp.square(iou_ref[...].astype(jnp.float32) - iou_target)
        out_ref[...] = focal * 20.0 + dice + mse


def _choose_tiles(bm, hw):
    # HW (lane) tile: multiple of 128 and <= HW whenever possible; cap keeps
    # double-buffered blocks well inside v7x's 64 MiB VMEM.
    hw_cap = 4096
    if hw % _LANES == 0:
        hw_tile = min(hw_cap, hw)
    elif hw < _LANES:
        hw_tile = hw                                   # single full-dim block
    else:
        hw_tile = min(hw_cap, (hw // _LANES) * _LANES)  # tail masked in-kernel

    # Row (sublane) tile: multiple of 8 (or full dim), and >= 2 row blocks
    # whenever possible so the "parallel" axis spans both v7x TensorCores.
    if bm <= 8:
        # TODO(synk): for BM <= 8 only one row block exists, so one v7x core
        # idles; a per-core HW split would need cross-core partial accumulators.
        row_tile = bm
    else:
        row_tile = min(256, _round_up(pl.cdiv(bm, 2), 8))
    return row_tile, hw_tile


def multimask_sam_loss(mask_pred, mask_target, iou_pred, *, focal_gamma=2.0):
    """Equivalent of MultimaskSamLoss(n_masks=M, reduction='none') forward."""
    B, M, H, W = mask_pred.shape
    HW = H * W
    BM = B * M

    # Pure reshapes only: no padding pass, no dtype-cast pass over HBM.
    p = mask_pred.reshape(BM, HW)
    t = mask_target.reshape(BM, HW)
    iou = iou_pred.reshape(BM, 1)

    row_tile, hw_tile = _choose_tiles(BM, HW)
    acc_lanes = _LANES if hw_tile % _LANES == 0 else hw_tile
    grid = (pl.cdiv(BM, row_tile), pl.cdiv(HW, hw_tile))

    kernel = functools.partial(
        _sam_loss_kernel, gamma=float(focal_gamma),
        hw=HW, hw_tile=hw_tile, acc_lanes=acc_lanes)

    out = pl.pallas_call(
        kernel,
        out_shape=jax.ShapeDtypeStruct((BM, 1), jnp.float32),
        grid_spec=pltpu.PrefetchScalarGridSpec(
            num_scalar_prefetch=0,
            grid=grid,
            in_specs=[
                pl.BlockSpec((row_tile, hw_tile), lambda i, k: (i, k)),  # pred
                pl.BlockSpec((row_tile, hw_tile), lambda i, k: (i, k)),  # target
                pl.BlockSpec((row_tile, 1), lambda i, k: (i, 0)),        # iou_pred
            ],
            out_specs=pl.BlockSpec((row_tile, 1), lambda i, k: (i, 0)),
            scratch_shapes=[pltpu.VMEM((row_tile, acc_lanes), jnp.float32)] * 4,
        ),
        compiler_params=pltpu.CompilerParams(
            dimension_semantics=("parallel", "arbitrary"),
            vmem_limit_bytes=32 * 1024 * 1024),
    )(p, t, iou)

    # min over n_masks (tiny (B, M) op; kept in the wrapper).
    return jnp.min(out[:, 0].reshape(B, M), axis=-1)


def _reference(mask_pred, mask_target, iou_pred, gamma=2.0):
    """Pure-JAX mirror of the PyTorch module (correctness check)."""
    B, M, H, W = mask_pred.shape
    p = mask_pred.reshape(B * M, H * W).astype(jnp.float32)
    t = mask_target.reshape(B * M, H * W).astype(jnp.float32)
    iou_pred_f = iou_pred.reshape(B * M).astype(jnp.float32)

    logits = jnp.stack([1.0 - p, p], axis=-1)                  # (BM, HW, 2)
    log_sm = jax.nn.log_softmax(logits, axis=-1)
    log_pt = jnp.take_along_axis(
        log_sm, (t > 0.5).astype(jnp.int32)[..., None], axis=-1)[..., 0]
    pt = jnp.exp(log_pt)
    focal = jnp.mean(-((1.0 - pt) ** gamma) * log_pt, axis=-1)

    s = jax.nn.sigmoid(p)
    inter = jnp.sum(s * t, axis=-1)
    ssum = jnp.sum(s, axis=-1)
    tsum = jnp.sum(t, axis=-1)
    dice = 1.0 - (2.0 * inter + 1.0) / (ssum + tsum + 1.0)
    iou_target = 1.0 - (inter + 1.0) / (ssum + tsum - inter + 1.0)
    mse = (iou_pred_f - iou_target) ** 2

    final = focal * 20.0 + dice + mse
    return jnp.min(final.reshape(B, M), axis=-1)


if __name__ == "__main__":
    key = jax.random.PRNGKey(0)

    # Case 1: single block.
    # Case 2: HW=2304, single 128-aligned HW block.
    # Case 3: HW=1600 -> two HW blocks with a masked tail (no HBM padding).
    # Case 4: BM=24 -> two row blocks (megacore path), partial last row block.
    for (B, M, H, W) in [(2, 3, 16, 16), (2, 3, 48, 48),
                         (2, 3, 40, 40), (8, 3, 16, 16)]:
        k1, k2, k3, key = jax.random.split(key, 4)
        mask_pred = jax.random.normal(k1, (B, M, H, W), dtype=jnp.float32) * 2.0
        mask_target = jax.random.bernoulli(k2, 0.4, (B, M, H, W)).astype(jnp.float32)
        iou_pred = jax.random.uniform(k3, (B, M), dtype=jnp.float32)

        out = multimask_sam_loss(mask_pred, mask_target, iou_pred, focal_gamma=2.0)
        out = jax.block_until_ready(out)

        ref = _reference(mask_pred, mask_target, iou_pred, gamma=2.0)
        assert out.shape == (B,), out.shape
        # Tolerance accounts for the approx-reciprocal pt path and f32 blocked
        # accumulation order differences.
        assert jnp.allclose(out, ref, rtol=2e-3, atol=1e-3), (out, ref)

    print("KERNEL_OK")
</pallas_src>

<mosaic_0001>
module attributes {stable_mosaic.version = 11 : i64} {
  func.func @_sam_loss_kernel(%arg0: i32, %arg1: i32, %arg2: memref<6x256xf32, #tpu.memory_space<vmem>>, %arg3: memref<6x256xf32, #tpu.memory_space<vmem>>, %arg4: memref<6x1xf32, #tpu.memory_space<vmem>>, %arg5: memref<6x1xf32, #tpu.memory_space<vmem>>, %arg6: memref<6x128xf32, #tpu.memory_space<vmem>>, %arg7: memref<6x128xf32, #tpu.memory_space<vmem>>, %arg8: memref<6x128xf32, #tpu.memory_space<vmem>>, %arg9: memref<6x128xf32, #tpu.memory_space<vmem>>) attributes {dimension_semantics = [#tpu.dimension_semantics<parallel>, #tpu.dimension_semantics<arbitrary>], iteration_bounds = array<i64: 1, 1>, scalar_prefetch = 0 : i64, scratch_operands = 4 : i64, tpu.core_type = #tpu.core_type<tc>, window_params = [{transform_indices = @transform_0, window_bounds = array<i64: 6, 256>}, {transform_indices = @transform_1, window_bounds = array<i64: 6, 256>}, {transform_indices = @transform_2, window_bounds = array<i64: 6, 1>}, {transform_indices = @transform_3, window_bounds = array<i64: 6, 1>}]} {
    %c0_i32 = arith.constant 0 : i32
    %0 = arith.cmpi eq, %arg1, %c0_i32 : i32
    %1 = arith.extui %0 : i1 to i32
    %c0_i32_0 = arith.constant 0 : i32
    %2 = arith.cmpi ne, %1, %c0_i32_0 : i32
    scf.if %2 {
      %cst_36 = arith.constant 0.000000e+00 : f32
      %75 = vector.broadcast %cst_36 : f32 to vector<6x128xf32>
      %c0_37 = arith.constant 0 : index
      %c0_38 = arith.constant 0 : index
      %76 = vector.load %arg6[%c0_37, %c0_38] : memref<6x128xf32, #tpu.memory_space<vmem>>, vector<6x128xf32>
      tpu.vector_store %arg6[%c0_37, %c0_38], %75 {strides = array<i32>} : memref<6x128xf32, #tpu.memory_space<vmem>>, vector<6x128xf32>,
      %cst_39 = arith.constant 0.000000e+00 : f32
      %77 = vector.broadcast %cst_39 : f32 to vector<6x128xf32>
      %c0_40 = arith.constant 0 : index
      %c0_41 = arith.constant 0 : index
      %78 = vector.load %arg7[%c0_40, %c0_41] : memref<6x128xf32, #tpu.memory_space<vmem>>, vector<6x128xf32>
      tpu.vector_store %arg7[%c0_40, %c0_41], %77 {strides = array<i32>} : memref<6x128xf32, #tpu.memory_space<vmem>>, vector<6x128xf32>,
      %cst_42 = arith.constant 0.000000e+00 : f32
      %79 = vector.broadcast %cst_42 : f32 to vector<6x128xf32>
      %c0_43 = arith.constant 0 : index
      %c0_44 = arith.constant 0 : index
      %80 = vector.load %arg8[%c0_43, %c0_44] : memref<6x128xf32, #tpu.memory_space<vmem>>, vector<6x128xf32>
      tpu.vector_store %arg8[%c0_43, %c0_44], %79 {strides = array<i32>} : memref<6x128xf32, #tpu.memory_space<vmem>>, vector<6x128xf32>,
      %cst_45 = arith.constant 0.000000e+00 : f32
      %81 = vector.broadcast %cst_45 : f32 to vector<6x128xf32>
      %c0_46 = arith.constant 0 : index
      %c0_47 = arith.constant 0 : index
      %82 = vector.load %arg9[%c0_46, %c0_47] : memref<6x128xf32, #tpu.memory_space<vmem>>, vector<6x128xf32>
      tpu.vector_store %arg9[%c0_46, %c0_47], %81 {strides = array<i32>} : memref<6x128xf32, #tpu.memory_space<vmem>>, vector<6x128xf32>,
    } else {
    }
    %c0 = arith.constant 0 : index
    %c0_1 = arith.constant 0 : index
    %3 = vector.load %arg2[%c0, %c0_1] : memref<6x256xf32, #tpu.memory_space<vmem>>, vector<6x256xf32>
    %c0_2 = arith.constant 0 : index
    %c0_3 = arith.constant 0 : index
    %4 = vector.load %arg3[%c0_2, %c0_3] : memref<6x256xf32, #tpu.memory_space<vmem>>, vector<6x256xf32>
    %cst = arith.constant 5.000000e-01 : f32
    %5 = vector.broadcast %cst : f32 to vector<6x256xf32>
    %6 = arith.cmpf ogt, %4, %5 : vector<6x256xf32>
    %cst_4 = arith.constant 2.000000e+00 : f32
    %7 = vector.broadcast %cst_4 : f32 to vector<6x256xf32>
    %8 = arith.mulf %7, %3 : vector<6x256xf32>
    %cst_5 = arith.constant 1.000000e+00 : f32
    %9 = vector.broadcast %cst_5 : f32 to vector<6x256xf32>
    %10 = arith.subf %8, %9 : vector<6x256xf32>
    %cst_6 = arith.constant 2.000000e+00 : f32
    %11 = vector.broadcast %cst_6 : f32 to vector<6x256xf32>
    %12 = arith.mulf %11, %3 : vector<6x256xf32>
    %cst_7 = arith.constant 1.000000e+00 : f32
    %13 = vector.broadcast %cst_7 : f32 to vector<6x256xf32>
    %14 = arith.subf %13, %12 : vector<6x256xf32>
    %15 = arith.select %6, %10, %14 : vector<6x256xi1>, vector<6x256xf32>
    %16 = math.absf %15 : vector<6x256xf32>
    %cst_8 = arith.constant 0.000000e+00 : f32
    %17 = vector.broadcast %cst_8 : f32 to vector<6x256xf32>
    %18 = arith.subf %17, %16 : vector<6x256xf32>
    %19 = math.exp %18 : vector<6x256xf32>
    %cst_9 = arith.constant 0.000000e+00 : f32
    %20 = vector.broadcast %cst_9 : f32 to vector<6x256xf32>
    %21 = arith.subf %20, %15 : vector<6x256xf32>
    %cst_10 = arith.constant 0.000000e+00 : f32
    %22 = vector.broadcast %cst_10 : f32 to vector<6x256xf32>
    %23 = arith.maximumf %21, %22 : vector<6x256xf32>
    %24 = math.log1p %19 : vector<6x256xf32>
    %25 = arith.addf %23, %24 : vector<6x256xf32>
    %cst_11 = arith.constant 0.000000e+00 : f32
    %26 = vector.broadcast %cst_11 : f32 to vector<6x256xf32>
    %27 = arith.subf %26, %25 : vector<6x256xf32>
    %cst_12 = arith.constant 0.000000e+00 : f32
    %28 = vector.broadcast %cst_12 : f32 to vector<6x256xf32>
    %29 = arith.cmpf oge, %15, %28 : vector<6x256xf32>
    %cst_13 = arith.constant 1.000000e+00 : f32
    %30 = vector.broadcast %cst_13 : f32 to vector<6x256xf32>
    %31 = arith.select %29, %30, %19 : vector<6x256xi1>, vector<6x256xf32>
    %cst_14 = arith.constant 1.000000e+00 : f32
    %32 = vector.broadcast %cst_14 : f32 to vector<6x256xf32>
    %33 = arith.addf %32, %19 : vector<6x256xf32>
    %34 = tpu.reciprocal %33 {approx = true} : vector<6x256xf32> -> vector<6x256xf32>
    %35 = arith.mulf %31, %34 : vector<6x256xf32>
    %cst_15 = arith.constant 1.000000e+00 : f32
    %36 = vector.broadcast %cst_15 : f32 to vector<6x256xf32>
    %37 = arith.subf %36, %35 : vector<6x256xf32>
    %38 = arith.mulf %37, %37 : vector<6x256xf32>
    %cst_16 = arith.constant 0.000000e+00 : f32
    %39 = vector.broadcast %cst_16 : f32 to vector<6x256xf32>
    %40 = arith.subf %39, %38 : vector<6x256xf32>
    %41 = arith.mulf %40, %27 : vector<6x256xf32>
    %42 = arith.negf %3 : vector<6x256xf32>
    %43 = math.exp %42 : vector<6x256xf32>
    %cst_17 = arith.constant 1.000000e+00 : f32
    %44 = vector.broadcast %cst_17 : f32 to vector<6x256xf32>
    %45 = arith.addf %44, %43 : vector<6x256xf32>
    %46 = arith.divf %44, %45 : vector<6x256xf32>
    %c0_18 = arith.constant 0 : index
    %c0_19 = arith.constant 0 : index
    %47 = vector.load %arg6[%c0_18, %c0_19] : memref<6x128xf32, #tpu.memory_space<vmem>>, vector<6x128xf32>
    %48 = vector.extract_strided_slice %41 {offsets = [0, 0], sizes = [6, 128], strides = [1, 1]} : vector<6x256xf32> to vector<6x128xf32>
    %49 = vector.extract_strided_slice %41 {offsets = [0, 128], sizes = [6, 128], strides = [1, 1]} : vector<6x256xf32> to vector<6x128xf32>
    %50 = arith.addf %48, %49 : vector<6x128xf32>
    %51 = arith.addf %47, %50 : vector<6x128xf32>
    %c0_20 = arith.constant 0 : index
    %c0_21 = arith.constant 0 : index
    %52 = vector.load %arg6[%c0_20, %c0_21] : memref<6x128xf32, #tpu.memory_space<vmem>>, vector<6x128xf32>
    tpu.vector_store %arg6[%c0_20, %c0_21], %51 {strides = array<i32>} : memref<6x128xf32, #tpu.memory_space<vmem>>, vector<6x128xf32>,
    %c0_22 = arith.constant 0 : index
    %c0_23 = arith.constant 0 : index
    %53 = vector.load %arg7[%c0_22, %c0_23] : memref<6x128xf32, #tpu.memory_space<vmem>>, vector<6x128xf32>
    %54 = arith.mulf %46, %4 : vector<6x256xf32>
    %55 = vector.extract_strided_slice %54 {offsets = [0, 0], sizes = [6, 128], strides = [1, 1]} : vector<6x256xf32> to vector<6x128xf32>
    %56 = vector.extract_strided_slice %54 {offsets = [0, 128], sizes = [6, 128], strides = [1, 1]} : vector<6x256xf32> to vector<6x128xf32>
    %57 = arith.addf %55, %56 : vector<6x128xf32>
    %58 = arith.addf %53, %57 : vector<6x128xf32>
    %c0_24 = arith.constant 0 : index
    %c0_25 = arith.constant 0 : index
    %59 = vector.load %arg7[%c0_24, %c0_25] : memref<6x128xf32, #tpu.memory_space<vmem>>, vector<6x128xf32>
    tpu.vector_store %arg7[%c0_24, %c0_25], %58 {strides = array<i32>} : memref<6x128xf32, #tpu.memory_space<vmem>>, vector<6x128xf32>,
    %c0_26 = arith.constant 0 : index
    %c0_27 = arith.constant 0 : index
    %60 = vector.load %arg8[%c0_26, %c0_27] : memref<6x128xf32, #tpu.memory_space<vmem>>, vector<6x128xf32>
    %61 = vector.extract_strided_slice %46 {offsets = [0, 0], sizes = [6, 128], strides = [1, 1]} : vector<6x256xf32> to vector<6x128xf32>
    %62 = vector.extract_strided_slice %46 {offsets = [0, 128], sizes = [6, 128], strides = [1, 1]} : vector<6x256xf32> to vector<6x128xf32>
    %63 = arith.addf %61, %62 : vector<6x128xf32>
    %64 = arith.addf %60, %63 : vector<6x128xf32>
    %c0_28 = arith.constant 0 : index
    %c0_29 = arith.constant 0 : index
    %65 = vector.load %arg8[%c0_28, %c0_29] : memref<6x128xf32, #tpu.memory_space<vmem>>, vector<6x128xf32>
    tpu.vector_store %arg8[%c0_28, %c0_29], %64 {strides = array<i32>} : memref<6x128xf32, #tpu.memory_space<vmem>>, vector<6x128xf32>,
    %c0_30 = arith.constant 0 : index
    %c0_31 = arith.constant 0 : index
    %66 = vector.load %arg9[%c0_30, %c0_31] : memref<6x128xf32, #tpu.memory_space<vmem>>, vector<6x128xf32>
    %67 = vector.extract_strided_slice %4 {offsets = [0, 0], sizes = [6, 128], strides = [1, 1]} : vector<6x256xf32> to vector<6x128xf32>
    %68 = vector.extract_strided_slice %4 {offsets = [0, 128], sizes = [6, 128], strides = [1, 1]} : vector<6x256xf32> to vector<6x128xf32>
    %69 = arith.addf %67, %68 : vector<6x128xf32>
    %70 = arith.addf %66, %69 : vector<6x128xf32>
    %c0_32 = arith.constant 0 : index
    %c0_33 = arith.constant 0 : index
    %71 = vector.load %arg9[%c0_32, %c0_33] : memref<6x128xf32, #tpu.memory_space<vmem>>, vector<6x128xf32>
    tpu.vector_store %arg9[%c0_32, %c0_33], %70 {strides = array<i32>} : memref<6x128xf32, #tpu.memory_space<vmem>>, vector<6x128xf32>,
    %c0_i32_34 = arith.constant 0 : i32
    %72 = arith.cmpi eq, %arg1, %c0_i32_34 : i32
    %73 = arith.extui %72 : i1 to i32
    %c0_i32_35 = arith.constant 0 : i32
    %74 = arith.cmpi ne, %73, %c0_i32_35 : i32
    scf.if %74 {
      %c0_36 = arith.constant 0 : index
      %c0_37 = arith.constant 0 : index
      %75 = vector.load %arg6[%c0_36, %c0_37] : memref<6x128xf32, #tpu.memory_space<vmem>>, vector<6x128xf32>
      %cst_38 = arith.constant dense<0.000000e+00> : vector<6xf32>
      %76 = vector.multi_reduction <add>, %75, %cst_38 [1] : vector<6x128xf32> to vector<6xf32>
      %77 = vector.shape_cast %76 : vector<6xf32> to vector<6x1xf32>
      %cst_39 = arith.constant 3.906250e-03 : f32
      %78 = vector.broadcast %cst_39 : f32 to vector<6x1xf32>
      %79 = arith.mulf %77, %78 : vector<6x1xf32>
      %c0_40 = arith.constant 0 : index
      %c0_41 = arith.constant 0 : index
      %80 = vector.load %arg7[%c0_40, %c0_41] : memref<6x128xf32, #tpu.memory_space<vmem>>, vector<6x128xf32>
      %cst_42 = arith.constant dense<0.000000e+00> : vector<6xf32>
      %81 = vector.multi_reduction <add>, %80, %cst_42 [1] : vector<6x128xf32> to vector<6xf32>
      %82 = vector.shape_cast %81 : vector<6xf32> to vector<6x1xf32>
      %c0_43 = arith.constant 0 : index
      %c0_44 = arith.constant 0 : index
      %83 = vector.load %arg8[%c0_43, %c0_44] : memref<6x128xf32, #tpu.memory_space<vmem>>, vector<6x128xf32>
      %cst_45 = arith.constant dense<0.000000e+00> : vector<6xf32>
      %84 = vector.multi_reduction <add>, %83, %cst_45 [1] : vector<6x128xf32> to vector<6xf32>
      %85 = vector.shape_cast %84 : vector<6xf32> to vector<6x1xf32>
      %c0_46 = arith.constant 0 : index
      %c0_47 = arith.constant 0 : index
      %86 = vector.load %arg9[%c0_46, %c0_47] : memref<6x128xf32, #tpu.memory_space<vmem>>, vector<6x128xf32>
      %cst_48 = arith.constant dense<0.000000e+00> : vector<6xf32>
      %87 = vector.multi_reduction <add>, %86, %cst_48 [1] : vector<6x128xf32> to vector<6xf32>
      %88 = vector.shape_cast %87 : vector<6xf32> to vector<6x1xf32>
      %cst_49 = arith.constant 2.000000e+00 : f32
      %89 = vector.broadcast %cst_49 : f32 to vector<6x1xf32>
      %90 = arith.mulf %89, %82 : vector<6x1xf32>
      %cst_50 = arith.constant 1.000000e+00 : f32
      %91 = vector.broadcast %cst_50 : f32 to vector<6x1xf32>
      %92 = arith.addf %90, %91 : vector<6x1xf32>
      %93 = arith.addf %85, %88 : vector<6x1xf32>
      %cst_51 = arith.constant 1.000000e+00 : f32
      %94 = vector.broadcast %cst_51 : f32 to vector<6x1xf32>
      %95 = arith.addf %93, %94 : vector<6x1xf32>
      %96 = arith.divf %92, %95 : vector<6x1xf32>
      %cst_52 = arith.constant 1.000000e+00 : f32
      %97 = vector.broadcast %cst_52 : f32 to vector<6x1xf32>
      %98 = arith.subf %97, %96 : vector<6x1xf32>
      %cst_53 = arith.constant 1.000000e+00 : f32
      %99 = vector.broadcast %cst_53 : f32 to vector<6x1xf32>
      %100 = arith.addf %82, %99 : vector<6x1xf32>
      %101 = arith.addf %85, %88 : vector<6x1xf32>
      %102 = arith.subf %101, %82 : vector<6x1xf32>
      %cst_54 = arith.constant 1.000000e+00 : f32
      %103 = vector.broadcast %cst_54 : f32 to vector<6x1xf32>
      %104 = arith.addf %102, %103 : vector<6x1xf32>
      %105 = arith.divf %100, %104 : vector<6x1xf32>
      %cst_55 = arith.constant 1.000000e+00 : f32
      %106 = vector.broadcast %cst_55 : f32 to vector<6x1xf32>
      %107 = arith.subf %106, %105 : vector<6x1xf32>
      %c0_56 = arith.constant 0 : index
      %c0_57 = arith.constant 0 : index
      %108 = vector.load %arg4[%c0_56, %c0_57] : memref<6x1xf32, #tpu.memory_space<vmem>>, vector<6x1xf32>
      %109 = arith.subf %108, %107 : vector<6x1xf32>
      %110 = arith.mulf %109, %109 : vector<6x1xf32>
      %cst_58 = arith.constant 2.000000e+01 : f32
      %111 = vector.broadcast %cst_58 : f32 to vector<6x1xf32>
      %112 = arith.mulf %79, %111 : vector<6x1xf32>
      %113 = arith.addf %112, %98 : vector<6x1xf32>
      %114 = arith.addf %113, %110 : vector<6x1xf32>
      %c0_59 = arith.constant 0 : index
      %c0_60 = arith.constant 0 : index
      %115 = vector.load %arg5[%c0_59, %c0_60] : memref<6x1xf32, #tpu.memory_space<vmem>>, vector<6x1xf32>
      tpu.vector_store %arg5[%c0_59, %c0_60], %114 {strides = array<i32>} : memref<6x1xf32, #tpu.memory_space<vmem>>, vector<6x1xf32>,
    } else {
    }
    return
  }
  func.func @transform_0(%arg0: i32, %arg1: i32) -> (i32, i32) {
    %c0_i32 = arith.constant 0 : i32
    return %arg0, %arg1 : i32, i32
  }
  func.func @transform_1(%arg0: i32, %arg1: i32) -> (i32, i32) {
    %c0_i32 = arith.constant 0 : i32
    return %arg0, %arg1 : i32, i32
  }
  func.func @transform_2(%arg0: i32, %arg1: i32) -> (i32, i32) {
    %c0_i32 = arith.constant 0 : i32
    %c0_i32_0 = arith.constant 0 : i32
    return %arg0, %c0_i32 : i32, i32
  }
  func.func @transform_3(%arg0: i32, %arg1: i32) -> (i32, i32) {
    %c0_i32 = arith.constant 0 : i32
    %c0_i32_0 = arith.constant 0 : i32
    return %arg0, %c0_i32 : i32, i32
  }
}

</mosaic_0001>

<llo_original>
// kernel: tpu_custom_call.1
$region0: #{tpu_custom_call.1}
  #allocation0 [shape = 'u32[]', space=smem, size = 0x4, offset = 0x4, fixed_abs, tag = 'smem constant byte address 0x4 - core index']
  #allocation1 [shape = 'u32[72,128]{1,0:T(1,128)}', space=vmem, size = 0x9000, scoped, tag = 'internal scratch']
  #allocation2 [shape = 'f32[6,128]{1,0:T(8,128)}', space=vmem, size = 0x1000, scoped, tag = 'scratch operand']
  #allocation3 [shape = 'f32[6,128]{1,0:T(8,128)}', space=vmem, size = 0x1000, scoped, tag = 'scratch operand']
  #allocation4 [shape = 'f32[6,128]{1,0:T(8,128)}', space=vmem, size = 0x1000, scoped, tag = 'scratch operand']
  #allocation5 [shape = 'f32[6,128]{1,0:T(8,128)}', space=vmem, size = 0x1000, scoped, tag = 'scratch operand']
  %s0 = inlined_call_operand.hbm [shape: f32[6,256], index: 0, kind: input, shape index: {}]
  %s1 = inlined_call_operand.hbm [shape: f32[6,256], index: 1, kind: input, shape index: {}]
  %s2 = inlined_call_operand.vmem [shape: f32[6,1], index: 2, kind: input, shape index: {}]
  %s3 = inlined_call_operand.vmem [shape: f32[6,1], index: 3, kind: output, shape index: {}]
  %s4 = sld [smem:[#allocation0]]
  $region38: #{tpu_custom_call.1} parent=0
    _
  %s6 = ssub.s32 1, %s4
  %s7 = scalar_select 0, %s6, %s4
  $region1: #{tpu_custom_call.1} parent=0
    #allocation6 [shape = 'u8[8192]{0}', space=vmem, size = 0x2000, scoped, tag = 'input window, operand 0, single buffered']
    #allocation7 [shape = 's32[1]{0}', space=sflag, size = 0x4, scoped, tag = 'scoped memory for tpu_custom_call.1']
    #allocation8 [shape = 'u8[8192]{0}', space=vmem, size = 0x2000, scoped, tag = 'input window, operand 1, single buffered']
    #allocation9 [shape = 's32[1]{0}', space=sflag, size = 0x4, scoped, tag = 'scoped memory for tpu_custom_call.1']
    %8 = vsyncpa [#allocation7], 0
    %9 = vsyncpa [#allocation9], 0
    // Predicated region
    $region2: #{tpu_custom_call.1} parent=1 // pred_check
      _
    $region3: #{tpu_custom_call.1} parent=1 // pred_check_branch
      %11 = sbr.rel (0) target = $region5
    $region4: #{tpu_custom_call.1} parent=1 // pred_region
      %13 = vsyncadd [#allocation7], 0
      %s15 = sshll.u32 %s0, 4
      %s16 = int_to_ptr.hbm [resolvable:$true] %s15
      %s17 = sshll.u32 [#allocation6], 4
      %s18 = int_to_ptr.vmem [resolvable:$true] %s17
      %20 = dma.hbm_to_vmem [thread:$0]  %s16, 256, %s18, [#allocation7]
    $region5: #{tpu_custom_call.1} parent=1 // pred_fallthru
      _
    // Predicated region
    $region6: #{tpu_custom_call.1} parent=1 // pred_check
      _
    $region7: #{tpu_custom_call.1} parent=1 // pred_check_branch
      %22 = sbr.rel (0) target = $region9
    $region8: #{tpu_custom_call.1} parent=1 // pred_region
      %24 = vsyncadd [#allocation9], 0
      %s26 = sshll.u32 %s1, 4
      %s27 = int_to_ptr.hbm [resolvable:$true] %s26
      %s28 = sshll.u32 [#allocation8], 4
      %s29 = int_to_ptr.vmem [resolvable:$true] %s28
      %31 = dma.hbm_to_vmem [thread:$0]  %s27, 256, %s29, [#allocation9]
    $region9: #{tpu_custom_call.1} parent=1 // pred_fallthru
      _
    // Predicated region
    $region10: #{tpu_custom_call.1} parent=1 // pred_check
      _
    $region11: #{tpu_custom_call.1} parent=1 // pred_check_branch
      %33 = sbr.rel (0) target = $region13
    $region12: #{tpu_custom_call.1} parent=1 // pred_region
      _
    $region13: #{tpu_custom_call.1} parent=1 // pred_fallthru
      _
    // Predicated region
    $region14: #{tpu_custom_call.1} parent=1 // pred_check
      _
    $region15: #{tpu_custom_call.1} parent=1 // pred_check_branch
      %35 = sbr.rel (0) target = $region17
    $region16: #{tpu_custom_call.1} parent=1 // pred_region
      %37 = dma.done [#allocation7], 256
    $region17: #{tpu_custom_call.1} parent=1 // pred_fallthru
      _
    // Predicated region
    $region18: #{tpu_custom_call.1} parent=1 // pred_check
      _
    $region19: #{tpu_custom_call.1} parent=1 // pred_check_branch
      %39 = sbr.rel (0) target = $region21
    $region20: #{tpu_custom_call.1} parent=1 // pred_region
      %41 = dma.done [#allocation9], 256
    $region21: #{tpu_custom_call.1} parent=1 // pred_fallthru
      _
    %p42 = scmp.eq.s32.totalorder 0, 0
    // Predicated region
    $region22: #{tpu_custom_call.1} parent=1 // pred_check
      %p43 = pneg %p42
    $region23: #{tpu_custom_call.1} parent=1 // pred_check_branch
      %45 = sbr.rel (%p43) target = $region25
    $region24: #{tpu_custom_call.1} parent=1 // pred_region
      %46 = vst [vmem:[#allocation2] sm:$0x3f] 0.0
      %47 = vst [vmem:[#allocation3] sm:$0x3f] 0.0
      %48 = vst [vmem:[#allocation4] sm:$0x3f] 0.0
      %49 = vst [vmem:[#allocation5] sm:$0x3f] 0.0
    $region25: #{tpu_custom_call.1} parent=1 // pred_fallthru
      _
    %v50 = vld [vmem:[#allocation6] sm:$0x3f]
    %v51 = vld [vmem:[#allocation6 + $0x8] sm:$0x3f]
    %v52 = vld [vmem:[#allocation8] sm:$0x3f]
    %v53 = vld [vmem:[#allocation8 + $0x8] sm:$0x3f]
    %vm54 = vcmp.gt.f32.partialorder %v52, 0.5
    %vm55 = vcmp.gt.f32.partialorder %v53, 0.5
    %v56 = vmul.f32 %v50, 2.0
    %v57 = vmul.f32 %v51, 2.0
    %v58 = vsub.f32 %v56, 1.0
    %v59 = vsub.f32 %v57, 1.0
    %v60 = vsub.f32 1.0, %v56
    %v61 = vsub.f32 1.0, %v57
    %v62 = vsel %vm54, %v58, %v60
    %v63 = vsel %vm55, %v59, %v61
    %v64 = vand.u32 2147483647, %v62
    %v65 = vand.u32 2147483647, %v63
    %v66 = vsub.f32 0.0, %v64
    %v67 = vsub.f32 0.0, %v65
    %v68 = vmul.f32 %v66, 1.442695
    %v69 = vpow.pop %v68
    %v70 = vmul.f32 %v67, 1.442695
    %v71 = vpow.pop %v70
    %v72 = vsub.f32 0.0, %v62
    %v73 = vsub.f32 0.0, %v63
    %v74 = vmax.f32 %v72, 0.0
    %v75 = vmax.f32 %v73, 0.0
    %v76 = vadd.f32 %v69, 1.0
    %v77 = vlog2.pop %v76
    %v78 = vmul.f32 %v77, 0.6931472
    %v79 = vmul.f32 -0.5, %v69
    %v80 = vadd.f32 %v79, 1.0
    %v81 = vmul.f32 %v80, %v69
    %v82 = vand.u32 2147483647, %v69
    %vm83 = vcmp.lt.f32.partialorder %v82, 0.0004427343
    %v84 = vsel %vm83, %v81, %v78
    %v85 = vadd.f32 %v71, 1.0
    %v86 = vlog2.pop %v85
    %v87 = vmul.f32 %v86, 0.6931472
    %v88 = vmul.f32 -0.5, %v71
    %v89 = vadd.f32 %v88, 1.0
    %v90 = vmul.f32 %v89, %v71
    %v91 = vand.u32 2147483647, %v71
    %vm92 = vcmp.lt.f32.partialorder %v91, 0.0004427343
    %v93 = vsel %vm92, %v90, %v87
    %v94 = vadd.f32 %v74, %v84
    %v95 = vadd.f32 %v75, %v93
    %v96 = vsub.f32 0.0, %v94
    %v97 = vsub.f32 0.0, %v95
    %vm98 = vcmp.ge.f32.partialorder %v62, 0.0
    %vm99 = vcmp.ge.f32.partialorder %v63, 0.0
    %v100 = vsel %vm98, 1.0, %v69
    %v101 = vsel %vm99, 1.0, %v71
    %v102 = vadd.f32 %v69, 1.0
    %v103 = vadd.f32 %v71, 1.0
    %v104 = vrcp.pop %v102
    %v105 = vrcp.pop %v103
    %v106 = vmul.f32 %v100, %v104
    %v107 = vmul.f32 %v101, %v105
    %v108 = vsub.f32 1.0, %v106
    %v109 = vsub.f32 1.0, %v107
    %v110 = vmul.f32 %v108, %v108
    %v111 = vmul.f32 %v109, %v109
    %v112 = vsub.f32 0.0, %v110
    %v113 = vsub.f32 0.0, %v111
    %v114 = vmul.f32 %v112, %v96
    %v115 = vmul.f32 %v113, %v97
    %v116 = vxor.u32 %v50, 2147483648
    %v117 = vxor.u32 %v51, 2147483648
    %v118 = vmul.f32 %v116, 1.442695
    %v119 = vpow.pop %v118
    %v120 = vmul.f32 %v117, 1.442695
    %v121 = vpow.pop %v120
    %v122 = vadd.f32 %v119, 1.0
    %v123 = vadd.f32 %v121, 1.0
    %v124 = vrcp.pop %v122
    %v125 = vmul.f32 %v122, %v124
    %v126 = vsub.f32 1.0, %v125
    %v127 = vmul.f32 %v124, %v126
    %v128 = vadd.f32 %v124, %v127
    %vm129 = vweird.f32 %v122
    %vm130 = vweird.f32 %v124
    %vm131 = vmor %vm129, %vm130
    %v132 = vsel %vm131, %v124, %v128
    %v133 = vand.u32 2147483647, %v122
    %vm134 = vcmp.eq.f32.partialorder %v133, 8.507059e+37
    %v135 = vand.u32 %v122, 2147483648
    %v136 = vor.u32 1.1754944e-38, %v135
    %v137 = vsel %vm134, %v136, %v132
    %v138 = vmul.f32 1.0, %v137
    %v139 = vrcp.pop %v123
    %v140 = vmul.f32 %v123, %v139
    %v141 = vsub.f32 1.0, %v140
    %v142 = vmul.f32 %v139, %v141
    %v143 = vadd.f32 %v139, %v142
    %vm144 = vweird.f32 %v123
    %vm145 = vweird.f32 %v139
    %vm146 = vmor %vm144, %vm145
    %v147 = vsel %vm146, %v139, %v143
    %v148 = vand.u32 2147483647, %v123
    %vm149 = vcmp.eq.f32.partialorder %v148, 8.507059e+37
    %v150 = vand.u32 %v123, 2147483648
    %v151 = vor.u32 1.1754944e-38, %v150
    %v152 = vsel %vm149, %v151, %v147
    %v153 = vmul.f32 1.0, %v152
    %v154 = vld [vmem:[#allocation2] sm:$0x3f]
    %v155 = vadd.f32 %v114, %v115
    %v156 = vadd.f32 %v154, %v155
    %157 = vst [vmem:[#allocation2] sm:$0x3f] %v156
    %v158 = vld [vmem:[#allocation3] sm:$0x3f]
    %v159 = vmul.f32 %v138, %v52
    %v160 = vmul.f32 %v153, %v53
    %v161 = vadd.f32 %v159, %v160
    %v162 = vadd.f32 %v158, %v161
    %163 = vst [vmem:[#allocation3] sm:$0x3f] %v162
    %v164 = vld [vmem:[#allocation4] sm:$0x3f]
    %v165 = vadd.f32 %v138, %v153
    %v166 = vadd.f32 %v164, %v165
    %167 = vst [vmem:[#allocation4] sm:$0x3f] %v166
    %v168 = vld [vmem:[#allocation5] sm:$0x3f]
    %v169 = vadd.f32 %v52, %v53
    %v170 = vadd.f32 %v168, %v169
    %171 = vst [vmem:[#allocation5] sm:$0x3f] %v170
    // Predicated region
    $region26: #{tpu_custom_call.1} parent=1 // pred_check
      %p172 = pneg %p42
    $region27: #{tpu_custom_call.1} parent=1 // pred_check_branch
      %174 = sbr.rel (%p172) target = $region29
    $region28: #{tpu_custom_call.1} parent=1 // pred_region
      %v175 = vld [vmem:[#allocation2] sm:$0x3f]
      %vm176 = vcmask 1045504
      %v177 = vsel %vm176, %v175, 0.0
      %178 = vadd.xlane.f32.xlu0 %v177
      %v179 = vpop.xlane.xlu0 %178
      %v180 = vmul.f32 %v179, 0.00390625
      %v181 = vld [vmem:[#allocation3] sm:$0x3f]
      %v182 = vsel %vm176, %v181, 0.0
      %183 = vadd.xlane.f32.xlu0 %v182
      %v184 = vpop.xlane.xlu0 %183
      %v185 = vld [vmem:[#allocation4] sm:$0x3f]
      %v186 = vsel %vm176, %v185, 0.0
      %187 = vadd.xlane.f32.xlu0 %v186
      %v188 = vpop.xlane.xlu0 %187
      %v189 = vld [vmem:[#allocation5] sm:$0x3f]
      %v190 = vsel %vm176, %v189, 0.0
      %191 = vadd.xlane.f32.xlu0 %v190
      %v192 = vpop.xlane.xlu0 %191
      %v193 = vmul.f32 %v184, 2.0
      %v194 = vadd.f32 %v193, 1.0
      %v195 = vadd.f32 %v188, %v192
      %v196 = vadd.f32 %v195, 1.0
      %v197 = vrcp.pop %v196
      %v198 = vmul.f32 %v196, %v197
      %v199 = vsub.f32 1.0, %v198
      %v200 = vmul.f32 %v197, %v199
      %v201 = vadd.f32 %v197, %v200
      %vm202 = vweird.f32 %v196
      %vm203 = vweird.f32 %v197
      %vm204 = vmor %vm202, %vm203
      %v205 = vsel %vm204, %v197, %v201
      %v206 = vand.u32 2147483647, %v196
      %vm207 = vcmp.eq.f32.partialorder %v206, 8.507059e+37
      %v208 = vand.u32 %v196, 2147483648
      %v209 = vor.u32 1.1754944e-38, %v208
      %v210 = vsel %vm207, %v209, %v205
      %v211 = vmul.f32 %v194, %v210
      %v212 = vsub.f32 1.0, %v211
      %v213 = vadd.f32 %v184, 1.0
      %v214 = vsub.f32 %v195, %v184
      %v215 = vadd.f32 %v214, 1.0
      %v216 = vrcp.pop %v215
      %v217 = vmul.f32 %v215, %v216
      %v218 = vsub.f32 1.0, %v217
      %v219 = vmul.f32 %v216, %v218
      %v220 = vadd.f32 %v216, %v219
      %vm221 = vweird.f32 %v215
      %vm222 = vweird.f32 %v216
      %vm223 = vmor %vm221, %vm222
      %v224 = vsel %vm223, %v216, %v220
      %v225 = vand.u32 2147483647, %v215
      %vm226 = vcmp.eq.f32.partialorder %v225, 8.507059e+37
      %v227 = vand.u32 %v215, 2147483648
      %v228 = vor.u32 1.1754944e-38, %v227
      %v229 = vsel %vm226, %v228, %v224
      %v230 = vmul.f32 %v213, %v229
      %v231 = vsub.f32 1.0, %v230
      %v232 = vld [vmem:[%s2] sm:$0x3f]
      %v233 = vsub.f32 %v232, %v231
      %v234 = vmul.f32 %v233, %v233
      %v235 = vmul.f32 %v180, 20.0
      %v236 = vadd.f32 %v235, %v212
      %v237 = vadd.f32 %v236, %v234
      %vm238 = vcmask 5120
      %239 = vst.msk [vmem:[%s3] sm:$0x3f] %vm238, %v237
    $region29: #{tpu_custom_call.1} parent=1 // pred_fallthru
      _
    // Predicated region
    $region30: #{tpu_custom_call.1} parent=1 // pred_check
      _
    $region31: #{tpu_custom_call.1} parent=1 // pred_check_branch
      %241 = sbr.rel (0) target = $region33
    $region32: #{tpu_custom_call.1} parent=1 // pred_region
      _
    $region33: #{tpu_custom_call.1} parent=1 // pred_fallthru
      _
    // Predicated region
    $region34: #{tpu_custom_call.1} parent=1 // pred_check
      _
    $region35: #{tpu_custom_call.1} parent=1 // pred_check_branch
      %243 = sbr.rel (0) target = $region37
    $region36: #{tpu_custom_call.1} parent=1 // pred_region
      _
    $region37: #{tpu_custom_call.1} parent=1 // pred_fallthru
      _
    %244 = vsyncpa [#allocation7], 1
    %245 = vsyncpa [#allocation9], 1

</llo_original>
